<compile_context>
chip_gen: v7x
topology: tpu7x:2x2x1
jax: 0.10.0
libtpu: 0.0.40
codegen_flags: <defaults>
</compile_context>

<pallas_src>
import functools

import jax
import jax.numpy as jnp
from jax.experimental import pallas as pl
from jax.experimental.pallas import tpu as pltpu

NUM_CLASSES = 2      # ClassifierHead_5 hard-codes num_classes=2
LANE = 128
SUBLANE = 8


def _round_up(n: int, m: int) -> int:
    return ((n + m - 1) // m) * m


def _head_kernel(x_ref, w1_ref, b1_ref, w2_ref, b2_ref, o_ref):
    # First Linear: (tile_b, Kp) @ (Kp, Mp) + (1, Mp) -- f32 accumulation on MXU.
    h = jnp.dot(x_ref[...], w1_ref[...], preferred_element_type=jnp.float32)
    h = h + b1_ref[...]
    # Exact (erf-based) GELU, matching nn.GELU() default approximate='none'.
    h = 0.5 * h * (1.0 + jax.lax.erf(h * 0.7071067811865476))
    # Second Linear: (tile_b, Mp) @ (Mp, 128) + (1, 128) -- lane-dense output.
    out = jnp.dot(h, w2_ref[...], preferred_element_type=jnp.float32) + b2_ref[...]
    o_ref[...] = out.astype(o_ref.dtype)


@functools.partial(jax.jit, static_argnames=("tile_b",))
def classifier_head_5(x, mask, params, *, tile_b: int = 512):
    """x: [B, base_dim] float32. mask is ignored (as in the reference module)."""
    del mask  # unused by ClassifierHead_5.forward
    w1, b1, w2, b2 = params["w1"], params["b1"], params["w2"], params["b2"]
    B, base_dim = x.shape
    mid_dim = w1.shape[1]
    n_out = w2.shape[1]

    # Padded (lane/sublane aligned) problem sizes.
    Kp = _round_up(base_dim, LANE)
    Mp = _round_up(mid_dim, LANE)
    Np = _round_up(n_out, LANE)          # lane-dense output (128 wide)

    # Batch tile: multiple of 8, no larger than the (sublane-rounded) batch.
    tile_b = max(SUBLANE, min(tile_b, _round_up(B, SUBLANE)))
    Bp = _round_up(B, tile_b)

    # Zero-padding is numerically exact here: padded x columns hit zero W1 rows, padded hidden
    # columns have zero bias -> GELU(0)=0 -> multiplied by zero W2 rows, padded output columns
    # are sliced off below.
    xp = jnp.zeros((Bp, Kp), jnp.float32).at[:B, :base_dim].set(x)
    w1p = jnp.zeros((Kp, Mp), jnp.float32).at[:base_dim, :mid_dim].set(w1)
    b1p = jnp.zeros((1, Mp), jnp.float32).at[:, :mid_dim].set(b1)
    w2p = jnp.zeros((Mp, Np), jnp.float32).at[:mid_dim, :n_out].set(w2)
    b2p = jnp.zeros((1, Np), jnp.float32).at[:, :n_out].set(b2)

    grid = (Bp // tile_b,)

    cost = pl.CostEstimate(
        flops=2 * Bp * (Kp * Mp + Mp * Np),
        transcendentals=Bp * Mp,                       # erf per hidden element
        bytes_accessed=4 * (Bp * Kp + Bp * Np + Kp * Mp + Mp + Mp * Np + Np),
    )

    out = pl.pallas_call(
        _head_kernel,
        out_shape=jax.ShapeDtypeStruct((Bp, Np), jnp.float32),
        grid_spec=pltpu.PrefetchScalarGridSpec(
            num_scalar_prefetch=0,
            grid=grid,
            in_specs=[
                pl.BlockSpec((tile_b, Kp), lambda i: (i, 0)),   # x: streamed per tile
                pl.BlockSpec((Kp, Mp), lambda i: (0, 0)),       # W1: resident
                pl.BlockSpec((1, Mp), lambda i: (0, 0)),        # b1: resident
                pl.BlockSpec((Mp, Np), lambda i: (0, 0)),       # W2: resident (lane-padded)
                pl.BlockSpec((1, Np), lambda i: (0, 0)),        # b2: resident (lane-padded)
            ],
            out_specs=pl.BlockSpec((tile_b, Np), lambda i: (i, 0)),
        ),
        compiler_params=pltpu.CompilerParams(
            dimension_semantics=("parallel",),         # v7x: shard batch tiles across both TCs
        ),
        cost_estimate=cost,
    )(xp, w1p, b1p, w2p, b2p)

    # Strip batch / lane padding back to the logical shape.
    return out[:B, :n_out]


def init_params(key, base_dim, mid_dim, num_classes=NUM_CLASSES):
    """Deterministic init mimicking PyTorch nn.Linear default (uniform +/- 1/sqrt(fan_in))."""
    k1, k2, k3, k4 = jax.random.split(key, 4)
    lim1 = 1.0 / jnp.sqrt(base_dim)
    lim2 = 1.0 / jnp.sqrt(mid_dim)
    return {
        "w1": jax.random.uniform(k1, (base_dim, mid_dim), jnp.float32, -lim1, lim1),
        "b1": jax.random.uniform(k2, (1, mid_dim), jnp.float32, -lim1, lim1),
        "w2": jax.random.uniform(k3, (mid_dim, num_classes), jnp.float32, -lim2, lim2),
        "b2": jax.random.uniform(k4, (1, num_classes), jnp.float32, -lim2, lim2),
    }


if __name__ == "__main__":
    key = jax.random.PRNGKey(0)
    kx, km, kp = jax.random.split(key, 3)

    B, base_dim, mid_dim = 2, 32, 64
    x = jax.random.normal(kx, (B, base_dim), jnp.float32)
    mask = jax.random.bernoulli(km, 0.5, (B,))   # unused by the head, per the reference forward

    params = init_params(kp, base_dim, mid_dim)

    out = classifier_head_5(x, mask, params)
    out = jax.block_until_ready(out)

    # Reference check in plain JAX (same semantics: Linear -> eval-Dropout -> erf-GELU -> Linear)
    h_ref = x @ params["w1"] + params["b1"]
    h_ref = 0.5 * h_ref * (1.0 + jax.lax.erf(h_ref / jnp.sqrt(2.0)))
    ref = h_ref @ params["w2"] + params["b2"]
    assert out.shape == (B, NUM_CLASSES), out.shape
    assert jnp.allclose(out, ref, atol=1e-5, rtol=1e-5), jnp.max(jnp.abs(out - ref))

    print("KERNEL_OK")
</pallas_src>

<mosaic_0001>
module attributes {stable_mosaic.version = 11 : i64} {
  func.func @_head_kernel(%arg0: i32, %arg1: memref<8x128xf32, #tpu.memory_space<vmem>>, %arg2: memref<128x128xf32, #tpu.memory_space<vmem>>, %arg3: memref<1x128xf32, #tpu.memory_space<vmem>>, %arg4: memref<128x128xf32, #tpu.memory_space<vmem>>, %arg5: memref<1x128xf32, #tpu.memory_space<vmem>>, %arg6: memref<8x128xf32, #tpu.memory_space<vmem>>) attributes {dimension_semantics = [#tpu.dimension_semantics<parallel>], iteration_bounds = array<i64: 1>, scalar_prefetch = 0 : i64, scratch_operands = 0 : i64, tpu.core_type = #tpu.core_type<tc>, window_params = [{transform_indices = @transform_0, window_bounds = array<i64: 8, 128>}, {pipeline_mode = #tpu.pipeline_mode<synchronous>, transform_indices = @transform_1, window_bounds = array<i64: 128, 128>}, {pipeline_mode = #tpu.pipeline_mode<synchronous>, transform_indices = @transform_2, window_bounds = array<i64: 1, 128>}, {pipeline_mode = #tpu.pipeline_mode<synchronous>, transform_indices = @transform_3, window_bounds = array<i64: 128, 128>}, {pipeline_mode = #tpu.pipeline_mode<synchronous>, transform_indices = @transform_4, window_bounds = array<i64: 1, 128>}, {transform_indices = @transform_5, window_bounds = array<i64: 8, 128>}]} {
    %c0 = arith.constant 0 : index
    %c0_0 = arith.constant 0 : index
    %0 = vector.load %arg1[%c0, %c0_0] : memref<8x128xf32, #tpu.memory_space<vmem>>, vector<8x128xf32>
    %c0_1 = arith.constant 0 : index
    %c0_2 = arith.constant 0 : index
    %1 = vector.load %arg2[%c0_1, %c0_2] : memref<128x128xf32, #tpu.memory_space<vmem>>, vector<128x128xf32>
    %cst = arith.constant dense<0.000000e+00> : vector<8x128xf32>
    %2 = tpu.matmul %0, %1, %cst {dimension_numbers = #tpu.dot_dimension_numbers<[1], [0], [0], [1], [0, 0, 1, 1], [], []>} : vector<8x128xf32>, vector<128x128xf32>, vector<8x128xf32> -> vector<8x128xf32>
    %c0_3 = arith.constant 0 : index
    %c0_4 = arith.constant 0 : index
    %3 = vector.load %arg3[%c0_3, %c0_4] : memref<1x128xf32, #tpu.memory_space<vmem>>, vector<1x128xf32>
    %4 = vector.broadcast %3 : vector<1x128xf32> to vector<8x128xf32>
    %5 = arith.addf %2, %4 : vector<8x128xf32>
    %cst_5 = arith.constant 5.000000e-01 : f32
    %6 = vector.broadcast %cst_5 : f32 to vector<8x128xf32>
    %7 = arith.mulf %6, %5 : vector<8x128xf32>
    %cst_6 = arith.constant 0.707106769 : f32
    %8 = vector.broadcast %cst_6 : f32 to vector<8x128xf32>
    %9 = arith.mulf %5, %8 : vector<8x128xf32>
    %10 = math.erf %9 : vector<8x128xf32>
    %cst_7 = arith.constant 1.000000e+00 : f32
    %11 = vector.broadcast %cst_7 : f32 to vector<8x128xf32>
    %12 = arith.addf %11, %10 : vector<8x128xf32>
    %13 = arith.mulf %7, %12 : vector<8x128xf32>
    %c0_8 = arith.constant 0 : index
    %c0_9 = arith.constant 0 : index
    %14 = vector.load %arg4[%c0_8, %c0_9] : memref<128x128xf32, #tpu.memory_space<vmem>>, vector<128x128xf32>
    %cst_10 = arith.constant dense<0.000000e+00> : vector<8x128xf32>
    %15 = tpu.matmul %13, %14, %cst_10 {dimension_numbers = #tpu.dot_dimension_numbers<[1], [0], [0], [1], [0, 0, 1, 1], [], []>} : vector<8x128xf32>, vector<128x128xf32>, vector<8x128xf32> -> vector<8x128xf32>
    %c0_11 = arith.constant 0 : index
    %c0_12 = arith.constant 0 : index
    %16 = vector.load %arg5[%c0_11, %c0_12] : memref<1x128xf32, #tpu.memory_space<vmem>>, vector<1x128xf32>
    %17 = vector.broadcast %16 : vector<1x128xf32> to vector<8x128xf32>
    %18 = arith.addf %15, %17 : vector<8x128xf32>
    %c0_13 = arith.constant 0 : index
    %c0_14 = arith.constant 0 : index
    %19 = vector.load %arg6[%c0_13, %c0_14] : memref<8x128xf32, #tpu.memory_space<vmem>>, vector<8x128xf32>
    tpu.vector_store %arg6[%c0_13, %c0_14], %18 {strides = array<i32>} : memref<8x128xf32, #tpu.memory_space<vmem>>, vector<8x128xf32>,
    return
  }
  func.func @transform_0(%arg0: i32) -> (i32, i32) {
    %c0_i32 = arith.constant 0 : i32
    %c0_i32_0 = arith.constant 0 : i32
    return %arg0, %c0_i32 : i32, i32
  }
  func.func @transform_1(%arg0: i32) -> (i32, i32) {
    %c0_i32 = arith.constant 0 : i32
    %c0_i32_0 = arith.constant 0 : i32
    %c0_i32_1 = arith.constant 0 : i32
    return %c0_i32, %c0_i32_0 : i32, i32
  }
  func.func @transform_2(%arg0: i32) -> (i32, i32) {
    %c0_i32 = arith.constant 0 : i32
    %c0_i32_0 = arith.constant 0 : i32
    %c0_i32_1 = arith.constant 0 : i32
    return %c0_i32, %c0_i32_0 : i32, i32
  }
  func.func @transform_3(%arg0: i32) -> (i32, i32) {
    %c0_i32 = arith.constant 0 : i32
    %c0_i32_0 = arith.constant 0 : i32
    %c0_i32_1 = arith.constant 0 : i32
    return %c0_i32, %c0_i32_0 : i32, i32
  }
  func.func @transform_4(%arg0: i32) -> (i32, i32) {
    %c0_i32 = arith.constant 0 : i32
    %c0_i32_0 = arith.constant 0 : i32
    %c0_i32_1 = arith.constant 0 : i32
    return %c0_i32, %c0_i32_0 : i32, i32
  }
  func.func @transform_5(%arg0: i32) -> (i32, i32) {
    %c0_i32 = arith.constant 0 : i32
    %c0_i32_0 = arith.constant 0 : i32
    return %arg0, %c0_i32 : i32, i32
  }
}

</mosaic_0001>

<llo_original>
// kernel: classifier_head_5.1
$region0: #{classifier_head_5.1}
  #allocation0 [shape = 'u32[]', space=smem, size = 0x4, offset = 0x4, fixed_abs, tag = 'smem constant byte address 0x4 - core index']
  #allocation1 [shape = 'u32[144,128]{1,0:T(1,128)}', space=vmem, size = 0x12000, scoped, tag = 'internal scratch']
  %s0 = inlined_call_operand.vmem [shape: f32[8,128], index: 0, kind: input, shape index: {}]
  %s1 = inlined_call_operand.vmem [shape: f32[128,128], index: 1, kind: input, shape index: {}]
  %s2 = inlined_call_operand.vmem [shape: f32[1,128], index: 2, kind: input, shape index: {}]
  %s3 = inlined_call_operand.vmem [shape: f32[128,128], index: 3, kind: input, shape index: {}]
  %s4 = inlined_call_operand.vmem [shape: f32[1,128], index: 4, kind: input, shape index: {}]
  %s5 = inlined_call_operand.vmem [shape: f32[8,128], index: 5, kind: output, shape index: {}]
  %s6 = sld [smem:[#allocation0]]
  $region30: #{classifier_head_5.1} parent=0
    _
  %s8 = ssub.s32 1, %s6
  %s9 = scalar_select 0, %s8, %s6
  // Predicated region
  $region2: #{classifier_head_5.1} parent=0 // pred_check
    _
  $region3: #{classifier_head_5.1} parent=0 // pred_check_branch
    %11 = sbr.rel (0) target = $region5
  $region4: #{classifier_head_5.1} parent=0 // pred_region
    _
  $region5: #{classifier_head_5.1} parent=0 // pred_fallthru
    _
  // Predicated region
  $region6: #{classifier_head_5.1} parent=0 // pred_check
    _
  $region7: #{classifier_head_5.1} parent=0 // pred_check_branch
    %13 = sbr.rel (0) target = $region9
  $region8: #{classifier_head_5.1} parent=0 // pred_region
    _
  $region9: #{classifier_head_5.1} parent=0 // pred_fallthru
    _
  // Predicated region
  $region10: #{classifier_head_5.1} parent=0 // pred_check
    _
  $region11: #{classifier_head_5.1} parent=0 // pred_check_branch
    %15 = sbr.rel (0) target = $region13
  $region12: #{classifier_head_5.1} parent=0 // pred_region
    _
  $region13: #{classifier_head_5.1} parent=0 // pred_fallthru
    _
  // Predicated region
  $region14: #{classifier_head_5.1} parent=0 // pred_check
    _
  $region15: #{classifier_head_5.1} parent=0 // pred_check_branch
    %17 = sbr.rel (0) target = $region17
  $region16: #{classifier_head_5.1} parent=0 // pred_region
    _
  $region17: #{classifier_head_5.1} parent=0 // pred_fallthru
    _
  // Predicated region
  $region18: #{classifier_head_5.1} parent=0 // pred_check
    _
  $region19: #{classifier_head_5.1} parent=0 // pred_check_branch
    %19 = sbr.rel (0) target = $region21
  $region20: #{classifier_head_5.1} parent=0 // pred_region
    _
  $region21: #{classifier_head_5.1} parent=0 // pred_fallthru
    _
  %v20 = vld [vmem:[%s0] sm:$0xff]
  %v21 = vld [vmem:[%s1] sm:$0xff]
  %v22 = vld [vmem:[%s1 + $0x8] sm:$0xff]
  %v23 = vld [vmem:[%s1 + $0x10] sm:$0xff]
  %v24 = vld [vmem:[%s1 + $0x18] sm:$0xff]
  %v25 = vld [vmem:[%s1 + $0x20] sm:$0xff]
  %v26 = vld [vmem:[%s1 + $0x28] sm:$0xff]
  %v27 = vld [vmem:[%s1 + $0x30] sm:$0xff]
  %v28 = vld [vmem:[%s1 + $0x38] sm:$0xff]
  %v29 = vld [vmem:[%s1 + $0x40] sm:$0xff]
  %v30 = vld [vmem:[%s1 + $0x48] sm:$0xff]
  %v31 = vld [vmem:[%s1 + $0x50] sm:$0xff]
  %v32 = vld [vmem:[%s1 + $0x58] sm:$0xff]
  %v33 = vld [vmem:[%s1 + $0x60] sm:$0xff]
  %v34 = vld [vmem:[%s1 + $0x68] sm:$0xff]
  %v35 = vld [vmem:[%s1 + $0x70] sm:$0xff]
  %v36 = vld [vmem:[%s1 + $0x78] sm:$0xff]
  %v37 = vld [vmem:[%s2] sm:$0x1]
  %v39 = vlaneseq
  %v40 = vshrl.u32 %v39, 7
  %v41 = vsub.s32 0, %v40
  %v42 = vrot.slane %v37, %v41
  %44 = vmatprep.subr.mxu0 0.0
  %45 = vmatpush1.msra.mxu0 %v21
  %46 = vmatprep.subr.mxu0 0.0
  %47 = vmatpush1.msra.mxu0 %v22
  %48 = vmatprep.subr.mxu0 0.0
  %49 = vmatpush1.msra.mxu0 %v23
  %50 = vmatprep.subr.mxu0 0.0
  %51 = vmatpush1.msra.mxu0 %v24
  %52 = vmatprep.subr.mxu0 0.0
  %53 = vmatpush1.msra.mxu0 %v25
  %54 = vmatprep.subr.mxu0 0.0
  %55 = vmatpush1.msra.mxu0 %v26
  %56 = vmatprep.subr.mxu0 0.0
  %57 = vmatpush1.msra.mxu0 %v27
  %58 = vmatprep.subr.mxu0 0.0
  %59 = vmatpush1.msra.mxu0 %v28
  %60 = vmatprep.subr.mxu0 0.0
  %61 = vmatpush1.msra.mxu0 %v29
  %62 = vmatprep.subr.mxu0 0.0
  %63 = vmatpush1.msra.mxu0 %v30
  %64 = vmatprep.subr.mxu0 0.0
  %65 = vmatpush1.msra.mxu0 %v31
  %66 = vmatprep.subr.mxu0 0.0
  %67 = vmatpush1.msra.mxu0 %v32
  %68 = vmatprep.subr.mxu0 0.0
  %69 = vmatpush1.msra.mxu0 %v33
  %70 = vmatprep.subr.mxu0 0.0
  %71 = vmatpush1.msra.mxu0 %v34
  %72 = vmatprep.subr.mxu0 0.0
  %73 = vmatpush1.msra.mxu0 %v35
  %74 = vmatprep.subr.mxu0 0.0
  %75 = vmatpush1.msra.mxu0 %v36
  %76 = vmatprep.subr.mxu0 0.0
  %77 = vmatpush1.msra.mxu0 0.0
  %78 = vmatprep.subr.mxu0 0.0
  %79 = vmatpush1.msra.mxu0 0.0
  %80 = vmatprep.subr.mxu0 0.0
  %81 = vmatpush1.msra.mxu0 0.0
  %82 = vmatprep.subr.mxu0 0.0
  %83 = vmatpush1.msra.mxu0 0.0
  %84 = vmatprep.subr.mxu0 0.0
  %85 = vmatpush1.msra.mxu0 0.0
  %86 = vmatprep.subr.mxu0 0.0
  %87 = vmatpush1.msra.mxu0 0.0
  %88 = vmatprep.subr.mxu0 0.0
  %89 = vmatpush1.msra.mxu0 0.0
  %90 = vmatprep.subr.mxu0 0.0
  %91 = vmatpush1.msra.mxu0 0.0
  %92 = vmatprep.subr.mxu0 0.0
  %93 = vmatpush1.msra.mxu0 0.0
  %94 = vmatprep.subr.mxu0 0.0
  %95 = vmatpush1.msra.mxu0 0.0
  %96 = vmatprep.subr.mxu0 0.0
  %97 = vmatpush1.msra.mxu0 0.0
  %98 = vmatprep.subr.mxu0 0.0
  %99 = vmatpush1.msra.mxu0 0.0
  %100 = vmatprep.subr.mxu0 0.0
  %101 = vmatpush1.msra.mxu0 0.0
  %102 = vmatprep.subr.mxu0 0.0
  %103 = vmatpush1.msra.mxu0 0.0
  %104 = vmatprep.subr.mxu0 0.0
  %105 = vmatpush1.msra.mxu0 0.0
  %106 = vmatprep.subr.mxu0 0.0
  %107 = vmatpush1.msra.mxu0 0.0
  %108 = vmatprep.mubr.f32.mxu0 0.0
  %109 = vmatmul.mubr.f32.gmra.mrb[0].mxu0 %v20
  %v110 = vpop.f32.mrb[0].mxu0
  %v111 = vadd.f32 %v42, %v110
  %v112 = vpop.f32.mrb[0].mxu0
  %113 = vdwg.mxu0
  %v114 = vmul.f32 %v111, 0.5
  %v115 = vmul.f32 %v111, 0.70710677
  %v116 = verf.f32.pop %v115
  %v117 = vadd.f32 %v116, 1.0
  %v118 = vmul.f32 %v114, %v117
  %v119 = vld [vmem:[%s3] sm:$0xff]
  %v120 = vld [vmem:[%s3 + $0x8] sm:$0xff]
  %v121 = vld [vmem:[%s3 + $0x10] sm:$0xff]
  %v122 = vld [vmem:[%s3 + $0x18] sm:$0xff]
  %v123 = vld [vmem:[%s3 + $0x20] sm:$0xff]
  %v124 = vld [vmem:[%s3 + $0x28] sm:$0xff]
  %v125 = vld [vmem:[%s3 + $0x30] sm:$0xff]
  %v126 = vld [vmem:[%s3 + $0x38] sm:$0xff]
  %v127 = vld [vmem:[%s3 + $0x40] sm:$0xff]
  %v128 = vld [vmem:[%s3 + $0x48] sm:$0xff]
  %v129 = vld [vmem:[%s3 + $0x50] sm:$0xff]
  %v130 = vld [vmem:[%s3 + $0x58] sm:$0xff]
  %v131 = vld [vmem:[%s3 + $0x60] sm:$0xff]
  %v132 = vld [vmem:[%s3 + $0x68] sm:$0xff]
  %v133 = vld [vmem:[%s3 + $0x70] sm:$0xff]
  %v134 = vld [vmem:[%s3 + $0x78] sm:$0xff]
  %v135 = vld [vmem:[%s4] sm:$0x1]
  %v137 = vlaneseq
  %v138 = vshrl.u32 %v137, 7
  %v139 = vsub.s32 0, %v138
  %v140 = vrot.slane %v135, %v139
  %142 = vmatprep.subr.mxu0 0.0
  %143 = vmatpush1.msra.mxu0 %v119
  %144 = vmatprep.subr.mxu0 0.0
  %145 = vmatpush1.msra.mxu0 %v120
  %146 = vmatprep.subr.mxu0 0.0
  %147 = vmatpush1.msra.mxu0 %v121
  %148 = vmatprep.subr.mxu0 0.0
  %149 = vmatpush1.msra.mxu0 %v122
  %150 = vmatprep.subr.mxu0 0.0
  %151 = vmatpush1.msra.mxu0 %v123
  %152 = vmatprep.subr.mxu0 0.0
  %153 = vmatpush1.msra.mxu0 %v124
  %154 = vmatprep.subr.mxu0 0.0
  %155 = vmatpush1.msra.mxu0 %v125
  %156 = vmatprep.subr.mxu0 0.0
  %157 = vmatpush1.msra.mxu0 %v126
  %158 = vmatprep.subr.mxu0 0.0
  %159 = vmatpush1.msra.mxu0 %v127
  %160 = vmatprep.subr.mxu0 0.0
  %161 = vmatpush1.msra.mxu0 %v128
  %162 = vmatprep.subr.mxu0 0.0
  %163 = vmatpush1.msra.mxu0 %v129
  %164 = vmatprep.subr.mxu0 0.0
  %165 = vmatpush1.msra.mxu0 %v130
  %166 = vmatprep.subr.mxu0 0.0
  %167 = vmatpush1.msra.mxu0 %v131
  %168 = vmatprep.subr.mxu0 0.0
  %169 = vmatpush1.msra.mxu0 %v132
  %170 = vmatprep.subr.mxu0 0.0
  %171 = vmatpush1.msra.mxu0 %v133
  %172 = vmatprep.subr.mxu0 0.0
  %173 = vmatpush1.msra.mxu0 %v134
  %174 = vmatprep.subr.mxu0 0.0
  %175 = vmatpush1.msra.mxu0 0.0
  %176 = vmatprep.subr.mxu0 0.0
  %177 = vmatpush1.msra.mxu0 0.0
  %178 = vmatprep.subr.mxu0 0.0
  %179 = vmatpush1.msra.mxu0 0.0
  %180 = vmatprep.subr.mxu0 0.0
  %181 = vmatpush1.msra.mxu0 0.0
  %182 = vmatprep.subr.mxu0 0.0
  %183 = vmatpush1.msra.mxu0 0.0
  %184 = vmatprep.subr.mxu0 0.0
  %185 = vmatpush1.msra.mxu0 0.0
  %186 = vmatprep.subr.mxu0 0.0
  %187 = vmatpush1.msra.mxu0 0.0
  %188 = vmatprep.subr.mxu0 0.0
  %189 = vmatpush1.msra.mxu0 0.0
  %190 = vmatprep.subr.mxu0 0.0
  %191 = vmatpush1.msra.mxu0 0.0
  %192 = vmatprep.subr.mxu0 0.0
  %193 = vmatpush1.msra.mxu0 0.0
  %194 = vmatprep.subr.mxu0 0.0
  %195 = vmatpush1.msra.mxu0 0.0
  %196 = vmatprep.subr.mxu0 0.0
  %197 = vmatpush1.msra.mxu0 0.0
  %198 = vmatprep.subr.mxu0 0.0
  %199 = vmatpush1.msra.mxu0 0.0
  %200 = vmatprep.subr.mxu0 0.0
  %201 = vmatpush1.msra.mxu0 0.0
  %202 = vmatprep.subr.mxu0 0.0
  %203 = vmatpush1.msra.mxu0 0.0
  %204 = vmatprep.subr.mxu0 0.0
  %205 = vmatpush1.msra.mxu0 0.0
  %206 = vmatprep.mubr.f32.mxu0 0.0
  %207 = vmatmul.mubr.f32.gmra.mrb[0].mxu0 %v118
  %v208 = vpop.f32.mrb[0].mxu0
  %v209 = vadd.f32 %v140, %v208
  %v210 = vpop.f32.mrb[0].mxu0
  %211 = vdwg.mxu0
  %212 = vst [vmem:[%s5] sm:$0xff] %v209
  // Predicated region
  $region22: #{classifier_head_5.1} parent=0 // pred_check
    _
  $region23: #{classifier_head_5.1} parent=0 // pred_check_branch
    %214 = sbr.rel (0) target = $region25
  $region24: #{classifier_head_5.1} parent=0 // pred_region
    _
  $region25: #{classifier_head_5.1} parent=0 // pred_fallthru
    _
  // Predicated region
  $region26: #{classifier_head_5.1} parent=0 // pred_check
    _
  $region27: #{classifier_head_5.1} parent=0 // pred_check_branch
    %216 = sbr.rel (0) target = $region29
  $region28: #{classifier_head_5.1} parent=0 // pred_region
    _
  $region29: #{classifier_head_5.1} parent=0 // pred_fallthru
    _

</llo_original>
